<compile_context>
chip_gen: v6e
topology: v6e:2x2x1
jax: 0.10.0
libtpu: 0.0.40
codegen_flags: <defaults>
</compile_context>

<pallas_src>
import functools
import math

import jax
import jax.numpy as jnp
from jax.experimental import pallas as pl
from jax.experimental.pallas import tpu as pltpu


def _round_up(x, m):
    return (x + m - 1) // m * m


def _choose_tile_rows(rows, requested):
    """Multiple of 8, <= requested, and (when possible) giving >= 2 grid steps."""
    tile = max(8, min(_round_up(int(requested), 8), _round_up(rows, 8)))
    while tile > 8 and pl.cdiv(rows, tile) < 2:
        tile = max(8, (tile // 2) // 8 * 8)
    return tile


def _embedding_kernel(idx_ref, table_ref, o_ref, *, scale):
    # idx_ref:   (TM, 1)  int32 token ids
    # table_ref: (V,  D)  embedding table (resident in VMEM)
    # o_ref:     (TM, D)  output tile
    idx = idx_ref[...]                                   # (TM, 1) int32
    tm = idx_ref.shape[0]
    v = table_ref.shape[0]
    dt = table_ref.dtype

    # one_hot(ids) with the sqrt(d_model) scale folded into the "hot" value.
    vocab_iota = jax.lax.broadcasted_iota(jnp.int32, (tm, v), 1)
    eq = vocab_iota == idx                               # lane-broadcast compare
    onehot = jnp.where(eq, jnp.asarray(scale, dt), jnp.asarray(0, dt))

    # Gather-as-matmul on the MXU: (TM, V) @ (V, D) -> (TM, D)
    o_ref[...] = jnp.dot(
        onehot, table_ref[...], preferred_element_type=jnp.float32
    ).astype(o_ref.dtype)


def embeddings_forward(token_ids, table, *, tile_rows=1024,
                       vmem_limit_bytes=32 * 1024 * 1024):
    """token_ids: int array of shape (...,); table: (vocab, d_model).

    Returns table[token_ids] * sqrt(d_model), shape (..., d_model).
    """
    V, D = table.shape
    lead_shape = token_ids.shape
    rows = 1
    for s in lead_shape:
        rows *= int(s)
    scale = float(math.sqrt(D))

    tile = _choose_tile_rows(rows, tile_rows)
    grid = pl.cdiv(rows, tile)
    rows_p = grid * tile

    ids = token_ids.reshape(rows).astype(jnp.int32)
    ids = jnp.pad(ids, (0, rows_p - rows))               # pad with id 0, sliced off below
    ids2d = ids.reshape(rows_p, 1)

    kernel = functools.partial(_embedding_kernel, scale=scale)

    out = pl.pallas_call(
        kernel,
        out_shape=jax.ShapeDtypeStruct((rows_p, D), table.dtype),
        grid_spec=pltpu.PrefetchScalarGridSpec(
            num_scalar_prefetch=0,
            grid=(grid,),
            in_specs=[
                pl.BlockSpec((tile, 1), lambda i: (i, 0)),   # token-id tile
                pl.BlockSpec((V, D), lambda i: (0, 0)),      # full table, VMEM-resident
            ],
            out_specs=pl.BlockSpec((tile, D), lambda i: (i, 0)),
        ),
        compiler_params=pltpu.CompilerParams(
            dimension_semantics=("parallel",),
            vmem_limit_bytes=int(vmem_limit_bytes),
        ),
    )(ids2d, table)

    return out[:rows].reshape(*lead_shape, D)


if __name__ == "__main__":
    key = jax.random.PRNGKey(0)
    k_tab, k_idx = jax.random.split(key)

    d_model, vocab = 32, 128
    B, S = 2, 8

    # nn.Embedding default init: weights ~ N(0, 1)
    table = jax.random.normal(k_tab, (vocab, d_model), dtype=jnp.float32)
    token_ids = jax.random.randint(k_idx, (B, S), 0, vocab, dtype=jnp.int32)

    out = embeddings_forward(token_ids, table)
    out = jax.block_until_ready(out)

    ref = jnp.take(table, token_ids, axis=0) * math.sqrt(d_model)
    assert out.shape == (B, S, d_model)
    assert out.dtype == table.dtype
    assert jnp.allclose(out, ref, atol=1e-5, rtol=1e-5), "mismatch vs reference"

    print("KERNEL_OK")
</pallas_src>

<mosaic_0001>
module attributes {stable_mosaic.version = 11 : i64} {
  func.func @_embedding_kernel(%arg0: i32, %arg1: memref<8x1xi32, #tpu.memory_space<vmem>>, %arg2: memref<128x32xf32, #tpu.memory_space<vmem>>, %arg3: memref<8x32xf32, #tpu.memory_space<vmem>>) attributes {dimension_semantics = [#tpu.dimension_semantics<parallel>], iteration_bounds = array<i64: 2>, scalar_prefetch = 0 : i64, scratch_operands = 0 : i64, tpu.core_type = #tpu.core_type<tc>, window_params = [{transform_indices = @transform_0, window_bounds = array<i64: 8, 1>}, {pipeline_mode = #tpu.pipeline_mode<synchronous>, transform_indices = @transform_1, window_bounds = array<i64: 128, 32>}, {transform_indices = @transform_2, window_bounds = array<i64: 8, 32>}]} {
    %c0 = arith.constant 0 : index
    %c0_0 = arith.constant 0 : index
    %0 = vector.load %arg1[%c0, %c0_0] : memref<8x1xi32, #tpu.memory_space<vmem>>, vector<8x1xi32>
    %1 = tpu.iota {dimensions = array<i32: 1>} : vector<8x128xi32>
    %2 = vector.broadcast %0 : vector<8x1xi32> to vector<8x128xi32>
    %3 = arith.cmpi eq, %1, %2 : vector<8x128xi32>
    %cst = arith.constant 5.65685415 : f32
    %cst_1 = arith.constant 0.000000e+00 : f32
    %4 = vector.broadcast %cst : f32 to vector<8x128xf32>
    %5 = vector.broadcast %cst_1 : f32 to vector<8x128xf32>
    %6 = arith.select %3, %4, %5 : vector<8x128xi1>, vector<8x128xf32>
    %c0_2 = arith.constant 0 : index
    %c0_3 = arith.constant 0 : index
    %7 = vector.load %arg2[%c0_2, %c0_3] : memref<128x32xf32, #tpu.memory_space<vmem>>, vector<128x32xf32>
    %cst_4 = arith.constant dense<0.000000e+00> : vector<8x32xf32>
    %8 = tpu.matmul %6, %7, %cst_4 {dimension_numbers = #tpu.dot_dimension_numbers<[1], [0], [0], [1], [0, 0, 1, 1], [], []>} : vector<8x128xf32>, vector<128x32xf32>, vector<8x32xf32> -> vector<8x32xf32>
    %c0_5 = arith.constant 0 : index
    %c0_6 = arith.constant 0 : index
    %9 = vector.load %arg3[%c0_5, %c0_6] : memref<8x32xf32, #tpu.memory_space<vmem>>, vector<8x32xf32>
    tpu.vector_store %arg3[%c0_5, %c0_6], %8 {strides = array<i32>} : memref<8x32xf32, #tpu.memory_space<vmem>>, vector<8x32xf32>,
    return
  }
  func.func @transform_0(%arg0: i32) -> (i32, i32) {
    %c0_i32 = arith.constant 0 : i32
    %c0_i32_0 = arith.constant 0 : i32
    return %arg0, %c0_i32 : i32, i32
  }
  func.func @transform_1(%arg0: i32) -> (i32, i32) {
    %c0_i32 = arith.constant 0 : i32
    %c0_i32_0 = arith.constant 0 : i32
    %c0_i32_1 = arith.constant 0 : i32
    return %c0_i32, %c0_i32_0 : i32, i32
  }
  func.func @transform_2(%arg0: i32) -> (i32, i32) {
    %c0_i32 = arith.constant 0 : i32
    %c0_i32_0 = arith.constant 0 : i32
    return %arg0, %c0_i32 : i32, i32
  }
}

</mosaic_0001>

<llo_original>
// kernel: tpu_custom_call.1
$region0: #{tpu_custom_call.1}
  #allocation0 [shape = 'u32[]', space=smem, size = 0x4, offset = 0x4, fixed_abs, tag = 'smem constant byte address 0x4 - core index']
  #allocation1 [shape = 'u32[144,128]{1,0:T(1,128)}', space=vmem, size = 0x12000, scoped, tag = 'internal scratch']
  %s0 = inlined_call_operand.vmem [shape: s32[16,1], index: 0, kind: input, shape index: {}]
  %s1 = inlined_call_operand.vmem [shape: f32[128,32], index: 1, kind: input, shape index: {}]
  %s2 = inlined_call_operand.hbm [shape: f32[16,32], index: 2, kind: output, shape index: {}]
  %s3 = sld [smem:[#allocation0]]
  $region41: #{tpu_custom_call.1} parent=0
    _
  %s5 = ssub.s32 1, %s3
  %s6 = scalar_select 0, %s5, %s3
  $region1: #{tpu_custom_call.1} parent=0
    #allocation2 [shape = 'u8[8192]{0}', space=vmem, size = 0x2000, scoped, tag = 'output window, operand 0']
    #allocation3 [shape = 's32[2]{0}', space=sflag, size = 0x8, scoped, tag = 'scoped memory for tpu_custom_call.1']
    %7 = vsyncpa [#allocation3], 0
    %s8 = scalar_lea.sflag [#allocation3], 1
    %9 = vsyncpa %s8, 0
    loop: start=0, step=1, limit=4
    $region2: #{tpu_custom_call.1} parent=1 // loop_pre_header
      _
    $region3: #{tpu_custom_call.1} parent=1 // loop_header
      %s11 = sphi 0, %s15
      %p12 = scmp.ge.s32.totalorder %s11, 4
      %s21 = sphi 0, %s23
      %s24 = sphi 0, %s21
      %s25 = sphi 0, %s24
      %s41 = sphi 0, %s25
      %s45 = sphi 0, %s45
      %s47 = sphi 0, %s45
      %s48 = sphi 0, %s47
      %s62 = sphi 0, %s48
      %s68 = sphi 0, %s70
      %s71 = sphi 0, %s68
      %s72 = sphi 0, %s71
      %s88 = sphi 0, %s72
    $region4: #{tpu_custom_call.1} parent=1 // loop_header_branch
      %14 = sbr.rel (%p12) target = $region8
    $region5: #{tpu_custom_call.1} parent=1 // loop_body
      %s16 = ssub.s32 %s11, 1
      %s17 = ssub.s32 %s11, 2
      %s18 = sadd.s32 %s11, 1
      %s19 = ssub.s32 %s11, %s18
      %p20 = scmp.eq.s32.totalorder %s19, 0
      %s22 = sadd.s32 %s21, 1
      %s23 = scalar_select %p20, %s21, %s22
      %p26 = pneg %p20
      %p27 = scmp.eq.s32.totalorder %s11, 1
      %p28 = por %p26, %p27
      %p29 = scmp.ne.s32.totalorder %s21, %s24
      %p30 = scmp.eq.s32.totalorder %s11, 0
      %p31 = por %p29, %p30
      %p32 = scmp.ne.s32.totalorder %s21, %s24
      %p33 = scmp.eq.s32.totalorder %s16, 1
      %p34 = por %p32, %p33
      %p35 = scmp.ne.s32.totalorder %s24, %s25
      %p36 = scmp.eq.s32.totalorder %s16, 0
      %p37 = por %p35, %p36
      %p38 = scmp.ne.s32.totalorder %s24, %s25
      %p39 = scmp.eq.s32.totalorder %s17, 1
      %p40 = por %p38, %p39
      %p42 = scmp.ne.s32.totalorder %s25, %s41
      %p43 = scmp.eq.s32.totalorder %s17, 0
      %p44 = por %p42, %p43
      %s46 = sadd.s32 %s45, 1
      %p49 = scmp.eq.s32.totalorder %s11, 1
      %p50 = scmp.ne.s32.totalorder %s45, %s47
      %p51 = scmp.eq.s32.totalorder %s11, 0
      %p52 = por %p50, %p51
      %p53 = scmp.ne.s32.totalorder %s45, %s47
      %p54 = scmp.eq.s32.totalorder %s16, 1
      %p55 = por %p53, %p54
      %p56 = scmp.ne.s32.totalorder %s47, %s48
      %p57 = scmp.eq.s32.totalorder %s16, 0
      %p58 = por %p56, %p57
      %p59 = scmp.ne.s32.totalorder %s47, %s48
      %p60 = scmp.eq.s32.totalorder %s17, 1
      %p61 = por %p59, %p60
      %p63 = scmp.ne.s32.totalorder %s48, %s62
      %p64 = scmp.eq.s32.totalorder %s17, 0
      %p65 = por %p63, %p64
      %s66 = ssub.s32 %s11, %s18
      %p67 = scmp.eq.s32.totalorder %s66, 0
      %s69 = sadd.s32 %s68, 1
      %s70 = scalar_select %p67, %s68, %s69
      %p73 = pneg %p67
      %p74 = scmp.eq.s32.totalorder %s11, 1
      %p75 = por %p73, %p74
      %p76 = scmp.ne.s32.totalorder %s68, %s71
      %p77 = scmp.eq.s32.totalorder %s11, 0
      %p78 = por %p76, %p77
      %p79 = scmp.ne.s32.totalorder %s68, %s71
      %p80 = scmp.eq.s32.totalorder %s16, 1
      %p81 = por %p79, %p80
      %p82 = scmp.ne.s32.totalorder %s71, %s72
      %p83 = scmp.eq.s32.totalorder %s16, 0
      %p84 = por %p82, %p83
      %p85 = scmp.ne.s32.totalorder %s71, %s72
      %p86 = scmp.eq.s32.totalorder %s17, 1
      %p87 = por %p85, %p86
      %p89 = scmp.ne.s32.totalorder %s72, %s88
      %p90 = scmp.eq.s32.totalorder %s17, 0
      %p91 = por %p89, %p90
      %p92 = scmp.le.s32.totalorder 1, %s11
      %p93 = scmp.lt.s32.totalorder %s11, 3
      %p94 = pnand %p92, %p93
      %p95 = pneg %p94
      // Predicated region
      $region9: #{tpu_custom_call.1} parent=5 // pred_check
        _
      $region10: #{tpu_custom_call.1} parent=5 // pred_check_branch
        %97 = sbr.rel (%p94) target = $region12
      $region11: #{tpu_custom_call.1} parent=5 // pred_region
        %s98 = ssub.s32 %s11, 1
        // Predicated region
        $region13: #{tpu_custom_call.1} parent=11 // pred_check
          %p99 = pneg %p58
        $region14: #{tpu_custom_call.1} parent=11 // pred_check_branch
          %101 = sbr.rel (%p99) target = $region16
        $region15: #{tpu_custom_call.1} parent=11 // pred_region
          _
        $region16: #{tpu_custom_call.1} parent=11 // pred_fallthru
          _
      $region12: #{tpu_custom_call.1} parent=5 // pred_fallthru
        _
      %p102 = scmp.lt.s32.totalorder %s11, 2
      // Predicated region
      $region17: #{tpu_custom_call.1} parent=5 // pred_check
        %p103 = pneg %p102
      $region18: #{tpu_custom_call.1} parent=5 // pred_check_branch
        %105 = sbr.rel (%p103) target = $region20
      $region19: #{tpu_custom_call.1} parent=5 // pred_region
        // Predicated region
        $region21: #{tpu_custom_call.1} parent=19 // pred_check
          %p106 = pneg %p31
        $region22: #{tpu_custom_call.1} parent=19 // pred_check_branch
          %108 = sbr.rel (%p106) target = $region24
        $region23: #{tpu_custom_call.1} parent=19 // pred_region
          %p109 = scmp.lt.s32.totalorder %s11, 1
          %s110 = scalar_select %p109, %s11, 1
          %s111 = smul.addr %s110, 8
          %s112 = scalar_lea.vmem %s0, %s111
        $region24: #{tpu_custom_call.1} parent=19 // pred_fallthru
          _
      $region20: #{tpu_custom_call.1} parent=5 // pred_fallthru
        _
      %p113 = scmp.le.s32.totalorder 1, %s11
      %p114 = scmp.lt.s32.totalorder %s11, 3
      %p115 = pnand %p113, %p114
      %p116 = pneg %p115
      // Predicated region
      $region25: #{tpu_custom_call.1} parent=5 // pred_check
        _
      $region26: #{tpu_custom_call.1} parent=5 // pred_check_branch
        %118 = sbr.rel (%p115) target = $region28
      $region27: #{tpu_custom_call.1} parent=5 // pred_region
        %s119 = ssub.s32 %s11, 1
        %p120 = scmp.lt.s32.totalorder %s16, 1
        %s121 = scalar_select %p120, %s16, 1
        %s122 = smul.addr %s121, 8
        %s123 = scalar_lea.vmem %s0, %s122
        %p124 = pneg %p37
        %p125 = pneg %p34
        %p126 = pneg %p58
        %p127 = pneg %p55
        %p128 = pneg %p84
        %p129 = pneg %p81
        %s130 = sand.u32 %s71, 1
        %s131 = scalar_lea.sflag [#allocation3], %s130
        %s132 = sand.u32 %s71, 1
        %s133 = smul.addr %s132, 8
        %s134 = scalar_lea.vmem [#allocation2], %s133
        %p135 = scmp.lt.s32.totalorder %s16, 1
        %s136 = scalar_select %p135, %s16, 1
        %s137 = smul.addr %s136, 8
        %s138 = scalar_lea.vmem %s0, %s137
        %v139 = vld [vmem:[%s138] sm:$0xff]
        %v140 = vlaneseq
        %v141 = vand.u32 %v140, 127
        %142 = vset.pattern.permute.xlu0 0
        %143 = vperm.xlu0 %142, %v139
        %v144 = vpop.permute.xlu0 %143
        %vm145 = vcmp.eq.s32.totalorder %v141, %v144
        %v146 = vsel %vm145, 5.656854, 0.0
        %v147 = vld [vmem:[%s1] sm:$0xff]
        %v148 = vld [vmem:[%s1 + $0x8] sm:$0xff]
        %v149 = vld [vmem:[%s1 + $0x10] sm:$0xff]
        %v150 = vld [vmem:[%s1 + $0x18] sm:$0xff]
        %v151 = vld [vmem:[%s1 + $0x20] sm:$0xff]
        %v152 = vld [vmem:[%s1 + $0x28] sm:$0xff]
        %v153 = vld [vmem:[%s1 + $0x30] sm:$0xff]
        %v154 = vld [vmem:[%s1 + $0x38] sm:$0xff]
        %v155 = vld [vmem:[%s1 + $0x40] sm:$0xff]
        %v156 = vld [vmem:[%s1 + $0x48] sm:$0xff]
        %v157 = vld [vmem:[%s1 + $0x50] sm:$0xff]
        %v158 = vld [vmem:[%s1 + $0x58] sm:$0xff]
        %v159 = vld [vmem:[%s1 + $0x60] sm:$0xff]
        %v160 = vld [vmem:[%s1 + $0x68] sm:$0xff]
        %v161 = vld [vmem:[%s1 + $0x70] sm:$0xff]
        %v162 = vld [vmem:[%s1 + $0x78] sm:$0xff]
        %163 = vmatprep.subr.mxu0 0.0
        %164 = vmatpush1.msra.mxu0 %v162
        %165 = vmatprep.subr.mxu0 0.0
        %166 = vmatpush1.msra.mxu0 %v161
        %167 = vmatprep.subr.mxu0 0.0
        %168 = vmatpush1.msra.mxu0 %v160
        %169 = vmatprep.subr.mxu0 0.0
        %170 = vmatpush1.msra.mxu0 %v159
        %171 = vmatprep.subr.mxu0 0.0
        %172 = vmatpush1.msra.mxu0 %v158
        %173 = vmatprep.subr.mxu0 0.0
        %174 = vmatpush1.msra.mxu0 %v157
        %175 = vmatprep.subr.mxu0 0.0
        %176 = vmatpush1.msra.mxu0 %v156
        %177 = vmatprep.subr.mxu0 0.0
        %178 = vmatpush1.msra.mxu0 %v155
        %179 = vmatprep.subr.mxu0 0.0
        %180 = vmatpush1.msra.mxu0 %v154
        %181 = vmatprep.subr.mxu0 0.0
        %182 = vmatpush1.msra.mxu0 %v153
        %183 = vmatprep.subr.mxu0 0.0
        %184 = vmatpush1.msra.mxu0 %v152
        %185 = vmatprep.subr.mxu0 0.0
        %186 = vmatpush1.msra.mxu0 %v151
        %187 = vmatprep.subr.mxu0 0.0
        %188 = vmatpush1.msra.mxu0 %v150
        %189 = vmatprep.subr.mxu0 0.0
        %190 = vmatpush1.msra.mxu0 %v149
        %191 = vmatprep.subr.mxu0 0.0
        %192 = vmatpush1.msra.mxu0 %v148
        %193 = vmatprep.subr.mxu0 0.0
        %194 = vmatpush1.msra.mxu0 %v147
        %195 = vmatprep.subr.mxu0 0.0
        %196 = vmatpush2.msra.mxu0 0.0
        %197 = vmatprep.subr.mxu0 0.0
        %198 = vmatpush2.msra.mxu0 0.0
        %199 = vmatprep.subr.mxu0 0.0
        %200 = vmatpush2.msra.mxu0 0.0
        %201 = vmatprep.subr.mxu0 0.0
        %202 = vmatpush2.msra.mxu0 0.0
        %203 = vmatprep.subr.mxu0 0.0
        %204 = vmatpush2.msra.mxu0 0.0
        %205 = vmatprep.subr.mxu0 0.0
        %206 = vmatpush2.msra.mxu0 0.0
        %207 = vmatprep.subr.mxu0 0.0
        %208 = vmatpush2.msra.mxu0 0.0
        %209 = vmatprep.subr.mxu0 0.0
        %210 = vmatpush2.msra.mxu0 0.0
        %211 = vmatprep.subr.mxu0 0.0
        %212 = vmatpush2.msra.mxu0 0.0
        %213 = vmatprep.subr.mxu0 0.0
        %214 = vmatpush2.msra.mxu0 0.0
        %215 = vmatprep.subr.mxu0 0.0
        %216 = vmatpush2.msra.mxu0 0.0
        %217 = vmatprep.subr.mxu0 0.0
        %218 = vmatpush2.msra.mxu0 0.0
        %219 = vmatprep.subr.mxu0 0.0
        %220 = vmatpush2.msra.mxu0 0.0
        %221 = vmatprep.subr.mxu0 0.0
        %222 = vmatpush2.msra.mxu0 0.0
        %223 = vmatprep.subr.mxu0 0.0
        %224 = vmatpush2.msra.mxu0 0.0
        %225 = vmatprep.subr.mxu0 0.0
        %226 = vmatpush2.msra.mxu0 0.0
        %227 = vmatprep.mubr.f32.mxu0 0.0
        %228 = vmatmul.mubr.f32.gmra.mxu0 %v146
        %v229 = vpop.f32.mrf.mxu0
        %v230 = vadd.f32 0.0, %v229
        %v231 = vpop.f32.mrf.mxu0
        %232 = vdwg.mxu0
        %vm233 = vcmask 261120
        %234 = vst.msk [vmem:[%s134] sm:$0xff] %vm233, %v230
        %s235 = sand.u32 %s71, 1
        %s236 = scalar_lea.sflag [#allocation3], %s235
        %s237 = sand.u32 %s71, 1
        %s238 = smul.addr %s237, 8
        %s239 = scalar_lea.vmem [#allocation2], %s238
        // Predicated region
        $region29: #{tpu_custom_call.1} parent=27 // pred_check
          %p240 = pneg %p81
        $region30: #{tpu_custom_call.1} parent=27 // pred_check_branch
          %242 = sbr.rel (%p240) target = $region32
        $region31: #{tpu_custom_call.1} parent=27 // pred_region
          %s244 = ssub.s32 128, 128
          %245 = vsyncadd %s236, %s244
          %s246 = smul.addr %s16, 128
          %s247 = scalar_lea.hbm %s2, %s246
          %s249 = sshll.u32 %s239, 4
          %s250 = int_to_ptr.vmem [resolvable:$true] %s249
          %252 = dma.vmem_to_hbm [thread:$0]  %s250, 128, %s247, %s236
        $region32: #{tpu_custom_call.1} parent=27 // pred_fallthru
          _
      $region28: #{tpu_custom_call.1} parent=5 // pred_fallthru
        _
      %p253 = scmp.le.s32.totalorder 2, %s11
      // Predicated region
      $region33: #{tpu_custom_call.1} parent=5 // pred_check
        %p254 = pneg %p253
      $region34: #{tpu_custom_call.1} parent=5 // pred_check_branch
        %256 = sbr.rel (%p254) target = $region36
      $region35: #{tpu_custom_call.1} parent=5 // pred_region
        %s257 = ssub.s32 %s11, 2
        // Predicated region
        $region37: #{tpu_custom_call.1} parent=35 // pred_check
          %p258 = pneg %p87
        $region38: #{tpu_custom_call.1} parent=35 // pred_check_branch
          %260 = sbr.rel (%p258) target = $region40
        $region39: #{tpu_custom_call.1} parent=35 // pred_region
          %s261 = sand.u32 %s72, 1
          %s262 = scalar_lea.sflag [#allocation3], %s261
          %s263 = sand.u32 %s72, 1
          %s264 = smul.addr %s263, 8
          %s265 = scalar_lea.vmem [#allocation2], %s264
          %266 = dma.done %s262, 128
        $region40: #{tpu_custom_call.1} parent=35 // pred_fallthru
          _
      $region36: #{tpu_custom_call.1} parent=5 // pred_fallthru
        _
    $region6: #{tpu_custom_call.1} parent=1 // loop_footer
      %s15 = sadd.s32 1, %s11
    $region7: #{tpu_custom_call.1} parent=1 // loop_footer_branch
      %10 = sbr.rel target = $region3
    $region8: #{tpu_custom_call.1} parent=1 // loop_exit
      _
    %267 = vsyncpa [#allocation3], 1
    %s268 = scalar_lea.sflag [#allocation3], 1
    %269 = vsyncpa %s268, 1

</llo_original>
